<compile_context>
chip_gen: v7x
topology: tpu7x:2x2x1
jax: 0.10.0
libtpu: 0.0.40
codegen_flags: <defaults>
</compile_context>

<pallas_src>
import functools

import jax
import jax.numpy as jnp
from jax.experimental import pallas as pl
from jax.experimental.pallas import tpu as pltpu


def _round_up(v, m):
    return (v + m - 1) // m * m


def gaussian_encoder_kernel(x_ref, w1_ref, b1_ref, w2_ref, b2_ref,
                            w3_ref, b3_ref, out_ref):
    # In-kernel bf16 cast of the activation stream (x arrives as f32 from HBM).
    x = x_ref[...].astype(w1_ref.dtype)
    # Layer 1: (TILE_B, D) @ (D, H) -> f32 accum, bias + ReLU in f32.
    h1 = jnp.dot(x, w1_ref[...], preferred_element_type=jnp.float32)
    h1 = jnp.maximum(h1 + b1_ref[...], 0.0)
    # Layer 2: (TILE_B, H) @ (H, H) -> f32 accum, bias + ReLU in f32.
    h2 = jnp.dot(h1.astype(w2_ref.dtype), w2_ref[...],
                 preferred_element_type=jnp.float32)
    h2 = jnp.maximum(h2 + b2_ref[...], 0.0)
    # Layer 3: one lane-dense dot into a packed [mean | logvar | pad] slab.
    out = jnp.dot(h2.astype(w3_ref.dtype), w3_ref[...],
                  preferred_element_type=jnp.float32)
    out_ref[...] = (out + b3_ref[...]).astype(out_ref.dtype)


def prepare_gaussian_encoder_params(w1, b1, w2, b2, w3, b3):
    """One-time preprocessing (outside the per-call path): reshape biases,
    lane-pad the last layer to a multiple of 128, cast weights to bf16 and
    biases to f32. Returns (params, latent_dim)."""
    def as_row(b):
        return jnp.asarray(b).reshape(1, -1)

    b1, b2, b3 = as_row(b1), as_row(b2), as_row(b3)
    two_m = w3.shape[1]
    latent_dim = two_m // 2

    m2_pad = _round_up(two_m, 128)
    if m2_pad != two_m:
        pad = m2_pad - two_m
        w3 = jnp.pad(w3, ((0, 0), (0, pad)))
        b3 = jnp.pad(b3, ((0, 0), (0, pad)))

    bf16 = jnp.bfloat16
    params = (
        w1.astype(bf16), b1.astype(jnp.float32),
        w2.astype(bf16), b2.astype(jnp.float32),
        w3.astype(bf16), b3.astype(jnp.float32),
    )
    return params, latent_dim


@functools.partial(jax.jit, static_argnames=("latent_dim", "tile_b"))
def gaussian_encoder(x, params, *, latent_dim, tile_b=512):
    """Returns (mean, std) parameterizing Independent(Normal(mean, std), 1)."""
    w1, b1, w2, b2, w3, b3 = params
    B, D = x.shape
    H = w1.shape[1]
    M2_pad = w3.shape[1]
    M = latent_dim

    # Batch tiling: balance the tile so padding waste is bounded, and prefer
    # >= 2 grid steps so the "parallel" axis can use both TCs on v7x.
    n_steps = max(1, (B + tile_b - 1) // tile_b)
    if n_steps < 2 and B > 8:
        n_steps = 2
    TILE_B = _round_up((B + n_steps - 1) // n_steps, 8)
    B_pad = TILE_B * n_steps
    if B_pad != B:
        x = jnp.pad(x, ((0, B_pad - B), (0, 0)))

    def resident(shape):
        # Block index never changes across the grid -> keep resident in VMEM,
        # single-buffered (double-buffering resident weights only wastes VMEM).
        return pl.BlockSpec(shape, lambda i: (0, 0), pipeline_mode=pl.Buffered(1))

    # VMEM budget: single-buffered weights + double-buffered x / packed output.
    weight_bytes = (w1.size + w2.size + w3.size) * 2 + (b1.size + b2.size + b3.size) * 4
    stream_bytes = 2 * TILE_B * (D * x.dtype.itemsize + M2_pad * 2)
    vmem_limit = min(int(1.25 * (weight_bytes + stream_bytes)) + (8 << 20), 96 << 20)

    flops = 2 * B_pad * (D * H + H * H + H * M2_pad)
    bytes_accessed = (B_pad * D * x.dtype.itemsize   # x read (f32)
                      + weight_bytes                 # resident params (read once)
                      + B_pad * M2_pad * 2)          # bf16 packed output write

    packed = pl.pallas_call(
        gaussian_encoder_kernel,
        out_shape=jax.ShapeDtypeStruct((B_pad, M2_pad), jnp.bfloat16),
        grid=(n_steps,),
        in_specs=[
            pl.BlockSpec((TILE_B, D), lambda i: (i, 0)),   # x: batch-tiled, pipelined
            resident((D, H)), resident((1, H)),            # w1, b1
            resident((H, H)), resident((1, H)),            # w2, b2
            resident((H, M2_pad)), resident((1, M2_pad)),  # w3, b3 (packed, lane-padded)
        ],
        out_specs=pl.BlockSpec((TILE_B, M2_pad), lambda i: (i, 0)),
        compiler_params=pltpu.CompilerParams(
            dimension_semantics=("parallel",),
            vmem_limit_bytes=vmem_limit),
        cost_estimate=pl.CostEstimate(
            flops=flops, transcendentals=0, bytes_accessed=bytes_accessed),
    )(x, w1, b1, w2, b2, w3, b3)

    # Tiny epilogue on the real (B, 2M) slice: split and std = exp(0.5*logvar).
    out = packed[:B, :2 * M].astype(jnp.float32)
    mean = out[:, :M]
    std = jnp.exp(0.5 * out[:, M:])
    return mean, std


def _reference(x, w1, b1, w2, b2, w3, b3):
    # Same numerics as the kernel: bf16 MXU operands, f32 accumulation,
    # bf16 packed writeback, f32 epilogue.
    bf16 = jnp.bfloat16
    b1 = b1.reshape(1, -1)
    b2 = b2.reshape(1, -1)
    b3 = b3.reshape(1, -1)
    h1 = jnp.maximum(
        jnp.dot(x.astype(bf16), w1.astype(bf16),
                preferred_element_type=jnp.float32) + b1, 0.0)
    h2 = jnp.maximum(
        jnp.dot(h1.astype(bf16), w2.astype(bf16),
                preferred_element_type=jnp.float32) + b2, 0.0)
    out = jnp.dot(h2.astype(bf16), w3.astype(bf16),
                  preferred_element_type=jnp.float32) + b3
    out = out.astype(bf16).astype(jnp.float32)
    M = out.shape[1] // 2
    return out[:, :M], jnp.exp(0.5 * out[:, M:])


if __name__ == "__main__":
    # Small shapes consistent with the forward: flattened input -> MLP -> 2*latent.
    B, D, H, M = 16, 64, 128, 16

    key = jax.random.PRNGKey(0)
    k = jax.random.split(key, 7)
    x = jax.random.normal(k[0], (B, D), dtype=jnp.float32)
    w1 = jax.random.normal(k[1], (D, H), dtype=jnp.float32) * 0.1
    b1 = jax.random.normal(k[2], (H,), dtype=jnp.float32) * 0.1       # 1-D, like nn.Linear
    w2 = jax.random.normal(k[3], (H, H), dtype=jnp.float32) * 0.1
    b2 = jax.random.normal(k[4], (H,), dtype=jnp.float32) * 0.1
    w3 = jax.random.normal(k[5], (H, 2 * M), dtype=jnp.float32) * 0.1
    b3 = jax.random.normal(k[6], (2 * M,), dtype=jnp.float32) * 0.1

    # One-time parameter preprocessing, hoisted out of the per-call path.
    params, latent_dim = prepare_gaussian_encoder_params(w1, b1, w2, b2, w3, b3)

    mean, std = gaussian_encoder(x, params, latent_dim=latent_dim)
    jax.block_until_ready((mean, std))

    ref_mean, ref_std = _reference(x, w1, b1, w2, b2, w3, b3)
    assert mean.shape == (B, M) and std.shape == (B, M)
    assert jnp.allclose(mean, ref_mean, atol=2e-2, rtol=2e-2)
    assert jnp.allclose(std, ref_std, atol=2e-2, rtol=2e-2)
    assert bool(jnp.all(std > 0))

    # TODO(synk): td.Independent(td.Normal(...), 1) has no Pallas equivalent;
    # the kernel returns its sufficient parameters (mean, std) instead.
    print("KERNEL_OK")
</pallas_src>

<mosaic_0001>
module attributes {stable_mosaic.version = 11 : i64} {
  func.func @gaussian_encoder_kernel(%arg0: i32, %arg1: memref<8x64xf32, #tpu.memory_space<vmem>>, %arg2: memref<64x128xbf16, #tpu.memory_space<vmem>>, %arg3: memref<1x128xf32, #tpu.memory_space<vmem>>, %arg4: memref<128x128xbf16, #tpu.memory_space<vmem>>, %arg5: memref<1x128xf32, #tpu.memory_space<vmem>>, %arg6: memref<128x128xbf16, #tpu.memory_space<vmem>>, %arg7: memref<1x128xf32, #tpu.memory_space<vmem>>, %arg8: memref<8x128xbf16, #tpu.memory_space<vmem>>) attributes {dimension_semantics = [#tpu.dimension_semantics<parallel>], iteration_bounds = array<i64: 2>, scalar_prefetch = 0 : i64, scratch_operands = 0 : i64, tpu.core_type = #tpu.core_type<tc>, window_params = [{transform_indices = @transform_0, window_bounds = array<i64: 8, 64>}, {pipeline_mode = #tpu.pipeline_mode<synchronous>, transform_indices = @transform_1, window_bounds = array<i64: 64, 128>}, {pipeline_mode = #tpu.pipeline_mode<synchronous>, transform_indices = @transform_2, window_bounds = array<i64: 1, 128>}, {pipeline_mode = #tpu.pipeline_mode<synchronous>, transform_indices = @transform_3, window_bounds = array<i64: 128, 128>}, {pipeline_mode = #tpu.pipeline_mode<synchronous>, transform_indices = @transform_4, window_bounds = array<i64: 1, 128>}, {pipeline_mode = #tpu.pipeline_mode<synchronous>, transform_indices = @transform_5, window_bounds = array<i64: 128, 128>}, {pipeline_mode = #tpu.pipeline_mode<synchronous>, transform_indices = @transform_6, window_bounds = array<i64: 1, 128>}, {transform_indices = @transform_7, window_bounds = array<i64: 8, 128>}]} {
    %c0 = arith.constant 0 : index
    %c0_0 = arith.constant 0 : index
    %0 = vector.load %arg1[%c0, %c0_0] : memref<8x64xf32, #tpu.memory_space<vmem>>, vector<8x64xf32>
    %1 = arith.truncf %0 : vector<8x64xf32> to vector<8x64xbf16>
    %c0_1 = arith.constant 0 : index
    %c0_2 = arith.constant 0 : index
    %2 = vector.load %arg2[%c0_1, %c0_2] : memref<64x128xbf16, #tpu.memory_space<vmem>>, vector<64x128xbf16>
    %cst = arith.constant dense<0.000000e+00> : vector<8x128xf32>
    %3 = tpu.matmul %1, %2, %cst {dimension_numbers = #tpu.dot_dimension_numbers<[1], [0], [0], [1], [0, 0, 1, 1], [], []>} : vector<8x64xbf16>, vector<64x128xbf16>, vector<8x128xf32> -> vector<8x128xf32>
    %c0_3 = arith.constant 0 : index
    %c0_4 = arith.constant 0 : index
    %4 = vector.load %arg3[%c0_3, %c0_4] : memref<1x128xf32, #tpu.memory_space<vmem>>, vector<1x128xf32>
    %5 = vector.broadcast %4 : vector<1x128xf32> to vector<8x128xf32>
    %6 = arith.addf %3, %5 : vector<8x128xf32>
    %cst_5 = arith.constant 0.000000e+00 : f32
    %7 = vector.broadcast %cst_5 : f32 to vector<8x128xf32>
    %8 = arith.maximumf %6, %7 : vector<8x128xf32>
    %9 = arith.truncf %8 : vector<8x128xf32> to vector<8x128xbf16>
    %c0_6 = arith.constant 0 : index
    %c0_7 = arith.constant 0 : index
    %10 = vector.load %arg4[%c0_6, %c0_7] : memref<128x128xbf16, #tpu.memory_space<vmem>>, vector<128x128xbf16>
    %cst_8 = arith.constant dense<0.000000e+00> : vector<8x128xf32>
    %11 = tpu.matmul %9, %10, %cst_8 {dimension_numbers = #tpu.dot_dimension_numbers<[1], [0], [0], [1], [0, 0, 1, 1], [], []>} : vector<8x128xbf16>, vector<128x128xbf16>, vector<8x128xf32> -> vector<8x128xf32>
    %c0_9 = arith.constant 0 : index
    %c0_10 = arith.constant 0 : index
    %12 = vector.load %arg5[%c0_9, %c0_10] : memref<1x128xf32, #tpu.memory_space<vmem>>, vector<1x128xf32>
    %13 = vector.broadcast %12 : vector<1x128xf32> to vector<8x128xf32>
    %14 = arith.addf %11, %13 : vector<8x128xf32>
    %cst_11 = arith.constant 0.000000e+00 : f32
    %15 = vector.broadcast %cst_11 : f32 to vector<8x128xf32>
    %16 = arith.maximumf %14, %15 : vector<8x128xf32>
    %17 = arith.truncf %16 : vector<8x128xf32> to vector<8x128xbf16>
    %c0_12 = arith.constant 0 : index
    %c0_13 = arith.constant 0 : index
    %18 = vector.load %arg6[%c0_12, %c0_13] : memref<128x128xbf16, #tpu.memory_space<vmem>>, vector<128x128xbf16>
    %cst_14 = arith.constant dense<0.000000e+00> : vector<8x128xf32>
    %19 = tpu.matmul %17, %18, %cst_14 {dimension_numbers = #tpu.dot_dimension_numbers<[1], [0], [0], [1], [0, 0, 1, 1], [], []>} : vector<8x128xbf16>, vector<128x128xbf16>, vector<8x128xf32> -> vector<8x128xf32>
    %c0_15 = arith.constant 0 : index
    %c0_16 = arith.constant 0 : index
    %20 = vector.load %arg7[%c0_15, %c0_16] : memref<1x128xf32, #tpu.memory_space<vmem>>, vector<1x128xf32>
    %21 = vector.broadcast %20 : vector<1x128xf32> to vector<8x128xf32>
    %22 = arith.addf %19, %21 : vector<8x128xf32>
    %23 = arith.truncf %22 : vector<8x128xf32> to vector<8x128xbf16>
    %c0_17 = arith.constant 0 : index
    %c0_18 = arith.constant 0 : index
    %24 = vector.load %arg8[%c0_17, %c0_18] : memref<8x128xbf16, #tpu.memory_space<vmem>>, vector<8x128xbf16>
    tpu.vector_store %arg8[%c0_17, %c0_18], %23 {strides = array<i32>} : memref<8x128xbf16, #tpu.memory_space<vmem>>, vector<8x128xbf16>,
    return
  }
  func.func @transform_0(%arg0: i32) -> (i32, i32) {
    %c0_i32 = arith.constant 0 : i32
    %c0_i32_0 = arith.constant 0 : i32
    return %arg0, %c0_i32 : i32, i32
  }
  func.func @transform_1(%arg0: i32) -> (i32, i32) {
    %c0_i32 = arith.constant 0 : i32
    %c0_i32_0 = arith.constant 0 : i32
    %c0_i32_1 = arith.constant 0 : i32
    return %c0_i32, %c0_i32_0 : i32, i32
  }
  func.func @transform_2(%arg0: i32) -> (i32, i32) {
    %c0_i32 = arith.constant 0 : i32
    %c0_i32_0 = arith.constant 0 : i32
    %c0_i32_1 = arith.constant 0 : i32
    return %c0_i32, %c0_i32_0 : i32, i32
  }
  func.func @transform_3(%arg0: i32) -> (i32, i32) {
    %c0_i32 = arith.constant 0 : i32
    %c0_i32_0 = arith.constant 0 : i32
    %c0_i32_1 = arith.constant 0 : i32
    return %c0_i32, %c0_i32_0 : i32, i32
  }
  func.func @transform_4(%arg0: i32) -> (i32, i32) {
    %c0_i32 = arith.constant 0 : i32
    %c0_i32_0 = arith.constant 0 : i32
    %c0_i32_1 = arith.constant 0 : i32
    return %c0_i32, %c0_i32_0 : i32, i32
  }
  func.func @transform_5(%arg0: i32) -> (i32, i32) {
    %c0_i32 = arith.constant 0 : i32
    %c0_i32_0 = arith.constant 0 : i32
    %c0_i32_1 = arith.constant 0 : i32
    return %c0_i32, %c0_i32_0 : i32, i32
  }
  func.func @transform_6(%arg0: i32) -> (i32, i32) {
    %c0_i32 = arith.constant 0 : i32
    %c0_i32_0 = arith.constant 0 : i32
    %c0_i32_1 = arith.constant 0 : i32
    return %c0_i32, %c0_i32_0 : i32, i32
  }
  func.func @transform_7(%arg0: i32) -> (i32, i32) {
    %c0_i32 = arith.constant 0 : i32
    %c0_i32_0 = arith.constant 0 : i32
    return %arg0, %c0_i32 : i32, i32
  }
}

</mosaic_0001>

<llo_original>
// kernel: gaussian_encoder.1
$region0: #{gaussian_encoder.1}
  #allocation0 [shape = 'u32[]', space=smem, size = 0x4, offset = 0x4, fixed_abs, tag = 'smem constant byte address 0x4 - core index']
  #allocation1 [shape = 'u32[144,128]{1,0:T(1,128)}', space=vmem, size = 0x12000, scoped, tag = 'internal scratch']
  %s0 = inlined_call_operand.hbm [shape: f32[16,64], index: 0, kind: input, shape index: {}]
  %s1 = inlined_call_operand.hbm [shape: bf16[64,128], index: 1, kind: input, shape index: {}]
  %s2 = inlined_call_operand.vmem [shape: f32[1,128], index: 2, kind: input, shape index: {}]
  %s3 = inlined_call_operand.hbm [shape: bf16[128,128], index: 3, kind: input, shape index: {}]
  %s4 = inlined_call_operand.vmem [shape: f32[1,128], index: 4, kind: input, shape index: {}]
  %s5 = inlined_call_operand.hbm [shape: bf16[128,128], index: 5, kind: input, shape index: {}]
  %s6 = inlined_call_operand.vmem [shape: f32[1,128], index: 6, kind: input, shape index: {}]
  %s7 = inlined_call_operand.vmem [shape: bf16[16,128], index: 7, kind: output, shape index: {}]
  %s8 = sld [smem:[#allocation0]]
  $region77: #{gaussian_encoder.1} parent=0
    _
  %s10 = ssub.s32 1, %s8
  %s11 = scalar_select 0, %s10, %s8
  $region1: #{gaussian_encoder.1} parent=0
    #allocation2 [shape = 'u8[8192]{0}', space=vmem, size = 0x2000, scoped, tag = 'input window, operand 0']
    #allocation3 [shape = 's32[2]{0}', space=sflag, size = 0x8, scoped, tag = 'scoped memory for gaussian_encoder.1']
    #allocation4 [shape = 'u8[16384]{0}', space=vmem, size = 0x4000, scoped, tag = 'input window, operand 1, single buffered']
    #allocation5 [shape = 's32[1]{0}', space=sflag, size = 0x4, scoped, tag = 'scoped memory for gaussian_encoder.1']
    #allocation6 [shape = 'u8[32768]{0}', space=vmem, size = 0x8000, scoped, tag = 'input window, operand 3, single buffered']
    #allocation7 [shape = 'u8[32768]{0}', space=vmem, size = 0x8000, scoped, tag = 'input window, operand 5, single buffered']
    #allocation8 [shape = 's32[1]{0}', space=sflag, size = 0x4, scoped, tag = 'scoped memory for gaussian_encoder.1']
    %12 = vsyncpa [#allocation3], 0
    %s13 = scalar_lea.sflag [#allocation3], 1
    %14 = vsyncpa %s13, 0
    %15 = vsyncpa [#allocation5], 0
    %16 = vsyncpa [#allocation8], 0
    loop: start=0, step=1, limit=4
    $region2: #{gaussian_encoder.1} parent=1 // loop_pre_header
      _
    $region3: #{gaussian_encoder.1} parent=1 // loop_header
      %s18 = sphi 0, %s22
      %p19 = scmp.ge.s32.totalorder %s18, 4
      %s28 = sphi 0, %s30
      %s31 = sphi 0, %s28
      %s32 = sphi 0, %s31
      %s48 = sphi 0, %s32
      %s52 = sphi 0, %s52
      %s54 = sphi 0, %s52
      %s55 = sphi 0, %s54
      %s69 = sphi 0, %s55
      %s73 = sphi 0, %s73
      %s75 = sphi 0, %s73
      %s76 = sphi 0, %s75
      %s90 = sphi 0, %s76
      %s94 = sphi 0, %s94
      %s96 = sphi 0, %s94
      %s97 = sphi 0, %s96
      %s111 = sphi 0, %s97
      %s115 = sphi 0, %s115
      %s117 = sphi 0, %s115
      %s118 = sphi 0, %s117
      %s132 = sphi 0, %s118
      %s136 = sphi 0, %s136
      %s138 = sphi 0, %s136
      %s139 = sphi 0, %s138
      %s153 = sphi 0, %s139
      %s157 = sphi 0, %s157
      %s159 = sphi 0, %s157
      %s160 = sphi 0, %s159
      %s174 = sphi 0, %s160
      %s180 = sphi 0, %s182
      %s183 = sphi 0, %s180
      %s184 = sphi 0, %s183
      %s200 = sphi 0, %s184
    $region4: #{gaussian_encoder.1} parent=1 // loop_header_branch
      %21 = sbr.rel (%p19) target = $region8
    $region5: #{gaussian_encoder.1} parent=1 // loop_body
      %s23 = ssub.s32 %s18, 1
      %s24 = ssub.s32 %s18, 2
      %s25 = sadd.s32 %s18, 1
      %s26 = ssub.s32 %s18, %s25
      %p27 = scmp.eq.s32.totalorder %s26, 0
      %s29 = sadd.s32 %s28, 1
      %s30 = scalar_select %p27, %s28, %s29
      %p33 = pneg %p27
      %p34 = scmp.eq.s32.totalorder %s18, 1
      %p35 = por %p33, %p34
      %p36 = scmp.ne.s32.totalorder %s28, %s31
      %p37 = scmp.eq.s32.totalorder %s18, 0
      %p38 = por %p36, %p37
      %p39 = scmp.ne.s32.totalorder %s28, %s31
      %p40 = scmp.eq.s32.totalorder %s23, 1
      %p41 = por %p39, %p40
      %p42 = scmp.ne.s32.totalorder %s31, %s32
      %p43 = scmp.eq.s32.totalorder %s23, 0
      %p44 = por %p42, %p43
      %p45 = scmp.ne.s32.totalorder %s31, %s32
      %p46 = scmp.eq.s32.totalorder %s24, 1
      %p47 = por %p45, %p46
      %p49 = scmp.ne.s32.totalorder %s32, %s48
      %p50 = scmp.eq.s32.totalorder %s24, 0
      %p51 = por %p49, %p50
      %s53 = sadd.s32 %s52, 1
      %p56 = scmp.eq.s32.totalorder %s18, 1
      %p57 = scmp.ne.s32.totalorder %s52, %s54
      %p58 = scmp.eq.s32.totalorder %s18, 0
      %p59 = por %p57, %p58
      %p60 = scmp.ne.s32.totalorder %s52, %s54
      %p61 = scmp.eq.s32.totalorder %s23, 1
      %p62 = por %p60, %p61
      %p63 = scmp.ne.s32.totalorder %s54, %s55
      %p64 = scmp.eq.s32.totalorder %s23, 0
      %p65 = por %p63, %p64
      %p66 = scmp.ne.s32.totalorder %s54, %s55
      %p67 = scmp.eq.s32.totalorder %s24, 1
      %p68 = por %p66, %p67
      %p70 = scmp.ne.s32.totalorder %s55, %s69
      %p71 = scmp.eq.s32.totalorder %s24, 0
      %p72 = por %p70, %p71
      %s74 = sadd.s32 %s73, 1
      %p77 = scmp.eq.s32.totalorder %s18, 1
      %p78 = scmp.ne.s32.totalorder %s73, %s75
      %p79 = scmp.eq.s32.totalorder %s18, 0
      %p80 = por %p78, %p79
      %p81 = scmp.ne.s32.totalorder %s73, %s75
      %p82 = scmp.eq.s32.totalorder %s23, 1
      %p83 = por %p81, %p82
      %p84 = scmp.ne.s32.totalorder %s75, %s76
      %p85 = scmp.eq.s32.totalorder %s23, 0
      %p86 = por %p84, %p85
      %p87 = scmp.ne.s32.totalorder %s75, %s76
      %p88 = scmp.eq.s32.totalorder %s24, 1
      %p89 = por %p87, %p88
      %p91 = scmp.ne.s32.totalorder %s76, %s90
      %p92 = scmp.eq.s32.totalorder %s24, 0
      %p93 = por %p91, %p92
      %s95 = sadd.s32 %s94, 1
      %p98 = scmp.eq.s32.totalorder %s18, 1
      %p99 = scmp.ne.s32.totalorder %s94, %s96
      %p100 = scmp.eq.s32.totalorder %s18, 0
      %p101 = por %p99, %p100
      %p102 = scmp.ne.s32.totalorder %s94, %s96
      %p103 = scmp.eq.s32.totalorder %s23, 1
      %p104 = por %p102, %p103
      %p105 = scmp.ne.s32.totalorder %s96, %s97
      %p106 = scmp.eq.s32.totalorder %s23, 0
      %p107 = por %p105, %p106
      %p108 = scmp.ne.s32.totalorder %s96, %s97
      %p109 = scmp.eq.s32.totalorder %s24, 1
      %p110 = por %p108, %p109
      %p112 = scmp.ne.s32.totalorder %s97, %s111
      %p113 = scmp.eq.s32.totalorder %s24, 0
      %p114 = por %p112, %p113
      %s116 = sadd.s32 %s115, 1
      %p119 = scmp.eq.s32.totalorder %s18, 1
      %p120 = scmp.ne.s32.totalorder %s115, %s117
      %p121 = scmp.eq.s32.totalorder %s18, 0
      %p122 = por %p120, %p121
      %p123 = scmp.ne.s32.totalorder %s115, %s117
      %p124 = scmp.eq.s32.totalorder %s23, 1
      %p125 = por %p123, %p124
      %p126 = scmp.ne.s32.totalorder %s117, %s118
      %p127 = scmp.eq.s32.totalorder %s23, 0
      %p128 = por %p126, %p127
      %p129 = scmp.ne.s32.totalorder %s117, %s118
      %p130 = scmp.eq.s32.totalorder %s24, 1
      %p131 = por %p129, %p130
      %p133 = scmp.ne.s32.totalorder %s118, %s132
      %p134 = scmp.eq.s32.totalorder %s24, 0
      %p135 = por %p133, %p134
      %s137 = sadd.s32 %s136, 1
      %p140 = scmp.eq.s32.totalorder %s18, 1
      %p141 = scmp.ne.s32.totalorder %s136, %s138
      %p142 = scmp.eq.s32.totalorder %s18, 0
      %p143 = por %p141, %p142
      %p144 = scmp.ne.s32.totalorder %s136, %s138
      %p145 = scmp.eq.s32.totalorder %s23, 1
      %p146 = por %p144, %p145
      %p147 = scmp.ne.s32.totalorder %s138, %s139
      %p148 = scmp.eq.s32.totalorder %s23, 0
      %p149 = por %p147, %p148
      %p150 = scmp.ne.s32.totalorder %s138, %s139
      %p151 = scmp.eq.s32.totalorder %s24, 1
      %p152 = por %p150, %p151
      %p154 = scmp.ne.s32.totalorder %s139, %s153
      %p155 = scmp.eq.s32.totalorder %s24, 0
      %p156 = por %p154, %p155
      %s158 = sadd.s32 %s157, 1
      %p161 = scmp.eq.s32.totalorder %s18, 1
      %p162 = scmp.ne.s32.totalorder %s157, %s159
      %p163 = scmp.eq.s32.totalorder %s18, 0
      %p164 = por %p162, %p163
      %p165 = scmp.ne.s32.totalorder %s157, %s159
      %p166 = scmp.eq.s32.totalorder %s23, 1
      %p167 = por %p165, %p166
      %p168 = scmp.ne.s32.totalorder %s159, %s160
      %p169 = scmp.eq.s32.totalorder %s23, 0
      %p170 = por %p168, %p169
      %p171 = scmp.ne.s32.totalorder %s159, %s160
      %p172 = scmp.eq.s32.totalorder %s24, 1
      %p173 = por %p171, %p172
      %p175 = scmp.ne.s32.totalorder %s160, %s174
      %p176 = scmp.eq.s32.totalorder %s24, 0
      %p177 = por %p175, %p176
      %s178 = ssub.s32 %s18, %s25
      %p179 = scmp.eq.s32.totalorder %s178, 0
      %s181 = sadd.s32 %s180, 1
      %s182 = scalar_select %p179, %s180, %s181
      %p185 = pneg %p179
      %p186 = scmp.eq.s32.totalorder %s18, 1
      %p187 = por %p185, %p186
      %p188 = scmp.ne.s32.totalorder %s180, %s183
      %p189 = scmp.eq.s32.totalorder %s18, 0
      %p190 = por %p188, %p189
      %p191 = scmp.ne.s32.totalorder %s180, %s183
      %p192 = scmp.eq.s32.totalorder %s23, 1
      %p193 = por %p191, %p192
      %p194 = scmp.ne.s32.totalorder %s183, %s184
      %p195 = scmp.eq.s32.totalorder %s23, 0
      %p196 = por %p194, %p195
      %p197 = scmp.ne.s32.totalorder %s183, %s184
      %p198 = scmp.eq.s32.totalorder %s24, 1
      %p199 = por %p197, %p198
      %p201 = scmp.ne.s32.totalorder %s184, %s200
      %p202 = scmp.eq.s32.totalorder %s24, 0
      %p203 = por %p201, %p202
      %p204 = scmp.le.s32.totalorder 1, %s18
      %p205 = scmp.lt.s32.totalorder %s18, 3
      %p206 = pnand %p204, %p205
      %p207 = pneg %p206
      // Predicated region
      $region9: #{gaussian_encoder.1} parent=5 // pred_check
        _
      $region10: #{gaussian_encoder.1} parent=5 // pred_check_branch
        %209 = sbr.rel (%p206) target = $region12
      $region11: #{gaussian_encoder.1} parent=5 // pred_region
        %s210 = ssub.s32 %s18, 1
        // Predicated region
        $region13: #{gaussian_encoder.1} parent=11 // pred_check
          %p211 = pneg %p65
        $region14: #{gaussian_encoder.1} parent=11 // pred_check_branch
          %213 = sbr.rel (%p211) target = $region16
        $region15: #{gaussian_encoder.1} parent=11 // pred_region
          %s215 = ssub.s32 512, 512
          %216 = vsyncadd [#allocation5], %s215
          %s217 = sshll.u32 [#allocation4], 4
          %s218 = int_to_ptr.vmem [resolvable:$true] %s217
          %223 = dma.hbm_to_vmem [thread:$0]  %s1, 512, %s218, [#allocation5], 64, 64, 4
        $region16: #{gaussian_encoder.1} parent=11 // pred_fallthru
          _
        // Predicated region
        $region17: #{gaussian_encoder.1} parent=11 // pred_check
          %p224 = pneg %p86
        $region18: #{gaussian_encoder.1} parent=11 // pred_check_branch
          %226 = sbr.rel (%p224) target = $region20
        $region19: #{gaussian_encoder.1} parent=11 // pred_region
          _
        $region20: #{gaussian_encoder.1} parent=11 // pred_fallthru
          _
        // Predicated region
        $region21: #{gaussian_encoder.1} parent=11 // pred_check
          %p227 = pneg %p107
        $region22: #{gaussian_encoder.1} parent=11 // pred_check_branch
          %229 = sbr.rel (%p227) target = $region24
        $region23: #{gaussian_encoder.1} parent=11 // pred_region
          %s231 = ssub.s32 1024, 1024
          %232 = vsyncadd [#allocation5], %s231
          %s233 = sshll.u32 [#allocation6], 4
          %s234 = int_to_ptr.vmem [resolvable:$true] %s233
          %239 = dma.hbm_to_vmem [thread:$0]  %s3, 1024, %s234, [#allocation5], 64, 64, 4
        $region24: #{gaussian_encoder.1} parent=11 // pred_fallthru
          _
        // Predicated region
        $region25: #{gaussian_encoder.1} parent=11 // pred_check
          %p240 = pneg %p128
        $region26: #{gaussian_encoder.1} parent=11 // pred_check_branch
          %242 = sbr.rel (%p240) target = $region28
        $region27: #{gaussian_encoder.1} parent=11 // pred_region
          _
        $region28: #{gaussian_encoder.1} parent=11 // pred_fallthru
          _
        // Predicated region
        $region29: #{gaussian_encoder.1} parent=11 // pred_check
          %p243 = pneg %p149
        $region30: #{gaussian_encoder.1} parent=11 // pred_check_branch
          %245 = sbr.rel (%p243) target = $region32
        $region31: #{gaussian_encoder.1} parent=11 // pred_region
          %s247 = ssub.s32 1024, 1024
          %248 = vsyncadd [#allocation8], %s247
          %s249 = sshll.u32 [#allocation7], 4
          %s250 = int_to_ptr.vmem [resolvable:$true] %s249
          %255 = dma.hbm_to_vmem [thread:$0]  %s5, 1024, %s250, [#allocation8], 64, 64, 4
        $region32: #{gaussian_encoder.1} parent=11 // pred_fallthru
          _
        // Predicated region
        $region33: #{gaussian_encoder.1} parent=11 // pred_check
          %p256 = pneg %p170
        $region34: #{gaussian_encoder.1} parent=11 // pred_check_branch
          %258 = sbr.rel (%p256) target = $region36
        $region35: #{gaussian_encoder.1} parent=11 // pred_region
          _
        $region36: #{gaussian_encoder.1} parent=11 // pred_fallthru
          _
      $region12: #{gaussian_encoder.1} parent=5 // pred_fallthru
        _
      %p259 = scmp.lt.s32.totalorder %s18, 2
      // Predicated region
      $region37: #{gaussian_encoder.1} parent=5 // pred_check
        %p260 = pneg %p259
      $region38: #{gaussian_encoder.1} parent=5 // pred_check_branch
        %262 = sbr.rel (%p260) target = $region40
      $region39: #{gaussian_encoder.1} parent=5 // pred_region
        // Predicated region
        $region41: #{gaussian_encoder.1} parent=39 // pred_check
          %p263 = pneg %p38
        $region42: #{gaussian_encoder.1} parent=39 // pred_check_branch
          %265 = sbr.rel (%p263) target = $region44
        $region43: #{gaussian_encoder.1} parent=39 // pred_region
          %s266 = sand.u32 %s28, 1
          %s267 = scalar_lea.sflag [#allocation3], %s266
          %s268 = sand.u32 %s28, 1
          %s269 = smul.addr %s268, 8
          %s270 = scalar_lea.vmem [#allocation2], %s269
          %s272 = ssub.s32 128, 128
          %273 = vsyncadd %s267, %s272
          %s274 = smul.addr %s18, 128
          %s275 = scalar_lea.hbm %s0, %s274
          %s277 = sshll.u32 %s270, 4
          %s278 = int_to_ptr.vmem [resolvable:$true] %s277
          %280 = dma.hbm_to_vmem [thread:$0]  %s275, 128, %s278, %s267
        $region44: #{gaussian_encoder.1} parent=39 // pred_fallthru
          _
      $region40: #{gaussian_encoder.1} parent=5 // pred_fallthru
        _
      %p281 = scmp.le.s32.totalorder 1, %s18
      %p282 = scmp.lt.s32.totalorder %s18, 3
      %p283 = pnand %p281, %p282
      %p284 = pneg %p283
      // Predicated region
      $region45: #{gaussian_encoder.1} parent=5 // pred_check
        _
      $region46: #{gaussian_encoder.1} parent=5 // pred_check_branch
        %286 = sbr.rel (%p283) target = $region48
      $region47: #{gaussian_encoder.1} parent=5 // pred_region
        %s287 = ssub.s32 %s18, 1
        %s288 = sand.u32 %s31, 1
        %s289 = scalar_lea.sflag [#allocation3], %s288
        %s290 = sand.u32 %s31, 1
        %s291 = smul.addr %s290, 8
        %s292 = scalar_lea.vmem [#allocation2], %s291
        // Predicated region
        $region49: #{gaussian_encoder.1} parent=47 // pred_check
          %p293 = pneg %p44
        $region50: #{gaussian_encoder.1} parent=47 // pred_check_branch
          %295 = sbr.rel (%p293) target = $region52
        $region51: #{gaussian_encoder.1} parent=47 // pred_region
          %296 = dma.done %s289, 128
        $region52: #{gaussian_encoder.1} parent=47 // pred_fallthru
          _
        // Predicated region
        $region53: #{gaussian_encoder.1} parent=47 // pred_check
          %p297 = pneg %p65
        $region54: #{gaussian_encoder.1} parent=47 // pred_check_branch
          %299 = sbr.rel (%p297) target = $region56
        $region55: #{gaussian_encoder.1} parent=47 // pred_region
          %300 = dma.done [#allocation5], 512
        $region56: #{gaussian_encoder.1} parent=47 // pred_fallthru
          _
        // Predicated region
        $region57: #{gaussian_encoder.1} parent=47 // pred_check
          %p301 = pneg %p107
        $region58: #{gaussian_encoder.1} parent=47 // pred_check_branch
          %303 = sbr.rel (%p301) target = $region60
        $region59: #{gaussian_encoder.1} parent=47 // pred_region
          %304 = dma.done [#allocation5], 1024
        $region60: #{gaussian_encoder.1} parent=47 // pred_fallthru
          _
        // Predicated region
        $region61: #{gaussian_encoder.1} parent=47 // pred_check
          %p305 = pneg %p149
        $region62: #{gaussian_encoder.1} parent=47 // pred_check_branch
          %307 = sbr.rel (%p305) target = $region64
        $region63: #{gaussian_encoder.1} parent=47 // pred_region
          %308 = dma.done [#allocation8], 1024
        $region64: #{gaussian_encoder.1} parent=47 // pred_fallthru
          _
        %s309 = sand.u32 %s31, 1
        %s310 = scalar_lea.sflag [#allocation3], %s309
        %s311 = sand.u32 %s31, 1
        %s312 = smul.addr %s311, 8
        %s313 = scalar_lea.vmem [#allocation2], %s312
        %p314 = pneg %p44
        %p315 = pneg %p41
        %p316 = pneg %p65
        %p317 = pneg %p62
        %p318 = pneg %p86
        %p319 = pneg %p83
        %p320 = pneg %p107
        %p321 = pneg %p104
        %p322 = pneg %p128
        %p323 = pneg %p125
        %p324 = pneg %p149
        %p325 = pneg %p146
        %p326 = pneg %p170
        %p327 = pneg %p167
        %p328 = pneg %p196
        %p329 = pneg %p193
        %p330 = scmp.lt.s32.totalorder %s23, 1
        %s331 = scalar_select %p330, %s23, 1
        %s332 = smul.addr %s331, 4
        %s333 = scalar_lea.vmem %s7, %s332
        %p334 = scmp.lt.s32.totalorder %s23, 1
        %s335 = scalar_select %p334, %s23, 1
        %s336 = smul.addr %s335, 4
        %s337 = scalar_lea.vmem %s7, %s336
        %v339 = vld [vmem:[%s292] sm:$0xff]
        %v340 = vpack.c.bf16 %v339, %v339
        %v341 = vld [vmem:[#allocation4] sm:$0xf]
        %v342 = vld [vmem:[#allocation4 + $0x4] sm:$0xf]
        %v343 = vld [vmem:[#allocation4 + $0x8] sm:$0xf]
        %v344 = vld [vmem:[#allocation4 + $0xc] sm:$0xf]
        %v345 = vld [vmem:[#allocation4 + $0x10] sm:$0xf]
        %v346 = vld [vmem:[#allocation4 + $0x14] sm:$0xf]
        %v347 = vld [vmem:[#allocation4 + $0x18] sm:$0xf]
        %v348 = vld [vmem:[#allocation4 + $0x1c] sm:$0xf]
        %v349 = vld [vmem:[%s2] sm:$0x1]
        %v351 = vlaneseq
        %v352 = vshrl.u32 %v351, 7
        %v353 = vsub.s32 0, %v352
        %v354 = vrot.slane %v349, %v353
        %v364 = vunpack.c.l.b16 %v341
        %v365 = vunpack.c.l.b16 %v342
        %v366 = vunpack.c.l.b16 %v343
        %v367 = vunpack.c.l.b16 %v344
        %v368 = vunpack.c.l.b16 %v345
        %v369 = vunpack.c.l.b16 %v346
        %v370 = vunpack.c.l.b16 %v347
        %v371 = vunpack.c.l.b16 %v348
        %v372 = vpack.c.b16 %v365, %v364
        %v373 = vpack.c.b16 %v367, %v366
        %v374 = vpack.c.b16 %v369, %v368
        %v375 = vpack.c.b16 %v371, %v370
        %vm380 = vcmask 523264
        %v382 = vsel %vm380, %v340, 0
        %384 = vmatprep.subr.bf16.mxu0 0
        %385 = vmatpush1.bf16.msra.mxu0 %v372
        %386 = vmatprep.subr.bf16.mxu0 0
        %387 = vmatpush1.bf16.msra.mxu0 %v373
        %388 = vmatprep.subr.bf16.mxu0 0
        %389 = vmatpush1.bf16.msra.mxu0 %v374
        %390 = vmatprep.subr.bf16.mxu0 0
        %391 = vmatpush1.bf16.msra.mxu0 %v375
        %392 = vmatprep.subr.bf16.mxu0 0
        %393 = vmatpush1.bf16.msra.mxu0 0
        %394 = vmatprep.subr.bf16.mxu0 0
        %395 = vmatpush1.bf16.msra.mxu0 0
        %396 = vmatprep.subr.bf16.mxu0 0
        %397 = vmatpush1.bf16.msra.mxu0 0
        %398 = vmatprep.subr.bf16.mxu0 0
        %399 = vmatpush1.bf16.msra.mxu0 0
        %400 = vmatprep.subr.bf16.mxu0 0
        %401 = vmatpush1.bf16.msra.mxu0 0
        %402 = vmatprep.subr.bf16.mxu0 0
        %403 = vmatpush1.bf16.msra.mxu0 0
        %404 = vmatprep.subr.bf16.mxu0 0
        %405 = vmatpush1.bf16.msra.mxu0 0
        %406 = vmatprep.subr.bf16.mxu0 0
        %407 = vmatpush1.bf16.msra.mxu0 0
        %408 = vmatprep.subr.bf16.mxu0 0
        %409 = vmatpush1.bf16.msra.mxu0 0
        %410 = vmatprep.subr.bf16.mxu0 0
        %411 = vmatpush1.bf16.msra.mxu0 0
        %412 = vmatprep.subr.bf16.mxu0 0
        %413 = vmatpush1.bf16.msra.mxu0 0
        %414 = vmatprep.subr.bf16.mxu0 0
        %415 = vmatpush1.bf16.msra.mxu0 0
        %416 = vmatprep.mubr.bf16.mxu0 0
        %417 = vmatmul.mubr.bf16.gmra.mrb[0].mxu0 %v382
        %v418 = vpop.f32.mrb[0].mxu0
        %v419 = vadd.f32 %v354, %v418
        %v420 = vpop.f32.mrb[0].mxu0
        %v421 = vpop.f32.mrb[0].mxu0
        %v422 = vpop.f32.mrb[0].mxu0
        %423 = vdwg.mxu0
        %v424 = vmax.f32 %v419, 0.0
        %v425 = vpack.c.bf16 %v424, %v424
        %v426 = vld [vmem:[#allocation6] sm:$0xf]
        %v427 = vld [vmem:[#allocation6 + $0x4] sm:$0xf]
        %v428 = vld [vmem:[#allocation6 + $0x8] sm:$0xf]
        %v429 = vld [vmem:[#allocation6 + $0xc] sm:$0xf]
        %v430 = vld [vmem:[#allocation6 + $0x10] sm:$0xf]
        %v431 = vld [vmem:[#allocation6 + $0x14] sm:$0xf]
        %v432 = vld [vmem:[#allocation6 + $0x18] sm:$0xf]
        %v433 = vld [vmem:[#allocation6 + $0x1c] sm:$0xf]
        %v434 = vld [vmem:[#allocation6 + $0x20] sm:$0xf]
        %v435 = vld [vmem:[#allocation6 + $0x24] sm:$0xf]
        %v436 = vld [vmem:[#allocation6 + $0x28] sm:$0xf]
        %v437 = vld [vmem:[#allocation6 + $0x2c] sm:$0xf]
        %v438 = vld [vmem:[#allocation6 + $0x30] sm:$0xf]
        %v439 = vld [vmem:[#allocation6 + $0x34] sm:$0xf]
        %v440 = vld [vmem:[#allocation6 + $0x38] sm:$0xf]
        %v441 = vld [vmem:[#allocation6 + $0x3c] sm:$0xf]
        %v442 = vld [vmem:[%s4] sm:$0x1]
        %v444 = vlaneseq
        %v445 = vshrl.u32 %v444, 7
        %v446 = vsub.s32 0, %v445
        %v447 = vrot.slane %v442, %v446
        %v465 = vunpack.c.l.b16 %v426
        %v466 = vunpack.c.l.b16 %v427
        %v467 = vunpack.c.l.b16 %v428
        %v468 = vunpack.c.l.b16 %v429
        %v469 = vunpack.c.l.b16 %v430
        %v470 = vunpack.c.l.b16 %v431
        %v471 = vunpack.c.l.b16 %v432
        %v472 = vunpack.c.l.b16 %v433
        %v473 = vunpack.c.l.b16 %v434
        %v474 = vunpack.c.l.b16 %v435
        %v475 = vunpack.c.l.b16 %v436
        %v476 = vunpack.c.l.b16 %v437
        %v477 = vunpack.c.l.b16 %v438
        %v478 = vunpack.c.l.b16 %v439
        %v479 = vunpack.c.l.b16 %v440
        %v480 = vunpack.c.l.b16 %v441
        %v481 = vpack.c.b16 %v466, %v465
        %v482 = vpack.c.b16 %v468, %v467
        %v483 = vpack.c.b16 %v470, %v469
        %v484 = vpack.c.b16 %v472, %v471
        %v485 = vpack.c.b16 %v474, %v473
        %v486 = vpack.c.b16 %v476, %v475
        %v487 = vpack.c.b16 %v478, %v477
        %v488 = vpack.c.b16 %v480, %v479
        %497 = vmatprep.subr.bf16.mxu0 0
        %498 = vmatpush1.bf16.msra.mxu0 %v481
        %499 = vmatprep.subr.bf16.mxu0 0
        %500 = vmatpush1.bf16.msra.mxu0 %v482
        %501 = vmatprep.subr.bf16.mxu0 0
        %502 = vmatpush1.bf16.msra.mxu0 %v483
        %503 = vmatprep.subr.bf16.mxu0 0
        %504 = vmatpush1.bf16.msra.mxu0 %v484
        %505 = vmatprep.subr.bf16.mxu0 0
        %506 = vmatpush1.bf16.msra.mxu0 %v485
        %507 = vmatprep.subr.bf16.mxu0 0
        %508 = vmatpush1.bf16.msra.mxu0 %v486
        %509 = vmatprep.subr.bf16.mxu0 0
        %510 = vmatpush1.bf16.msra.mxu0 %v487
        %511 = vmatprep.subr.bf16.mxu0 0
        %512 = vmatpush1.bf16.msra.mxu0 %v488
        %513 = vmatprep.subr.bf16.mxu0 0
        %514 = vmatpush1.bf16.msra.mxu0 0
        %515 = vmatprep.subr.bf16.mxu0 0
        %516 = vmatpush1.bf16.msra.mxu0 0
        %517 = vmatprep.subr.bf16.mxu0 0
        %518 = vmatpush1.bf16.msra.mxu0 0
        %519 = vmatprep.subr.bf16.mxu0 0
        %520 = vmatpush1.bf16.msra.mxu0 0
        %521 = vmatprep.subr.bf16.mxu0 0
        %522 = vmatpush1.bf16.msra.mxu0 0
        %523 = vmatprep.subr.bf16.mxu0 0
        %524 = vmatpush1.bf16.msra.mxu0 0
        %525 = vmatprep.subr.bf16.mxu0 0
        %526 = vmatpush1.bf16.msra.mxu0 0
        %527 = vmatprep.subr.bf16.mxu0 0
        %528 = vmatpush1.bf16.msra.mxu0 0
        %529 = vmatprep.mubr.bf16.mxu0 0
        %530 = vmatmul.mubr.bf16.gmra.mrb[0].mxu0 %v425
        %v531 = vpop.f32.mrb[0].mxu0
        %v532 = vadd.f32 %v447, %v531
        %v533 = vpop.f32.mrb[0].mxu0
        %v534 = vpop.f32.mrb[0].mxu0
        %v535 = vpop.f32.mrb[0].mxu0
        %536 = vdwg.mxu0
        %v537 = vmax.f32 %v532, 0.0
        %v538 = vpack.c.bf16 %v537, %v537
        %v539 = vld [vmem:[#allocation7] sm:$0xf]
        %v540 = vld [vmem:[#allocation7 + $0x4] sm:$0xf]
        %v541 = vld [vmem:[#allocation7 + $0x8] sm:$0xf]
        %v542 = vld [vmem:[#allocation7 + $0xc] sm:$0xf]
        %v543 = vld [vmem:[#allocation7 + $0x10] sm:$0xf]
        %v544 = vld [vmem:[#allocation7 + $0x14] sm:$0xf]
        %v545 = vld [vmem:[#allocation7 + $0x18] sm:$0xf]
        %v546 = vld [vmem:[#allocation7 + $0x1c] sm:$0xf]
        %v547 = vld [vmem:[#allocation7 + $0x20] sm:$0xf]
        %v548 = vld [vmem:[#allocation7 + $0x24] sm:$0xf]
        %v549 = vld [vmem:[#allocation7 + $0x28] sm:$0xf]
        %v550 = vld [vmem:[#allocation7 + $0x2c] sm:$0xf]
        %v551 = vld [vmem:[#allocation7 + $0x30] sm:$0xf]
        %v552 = vld [vmem:[#allocation7 + $0x34] sm:$0xf]
        %v553 = vld [vmem:[#allocation7 + $0x38] sm:$0xf]
        %v554 = vld [vmem:[#allocation7 + $0x3c] sm:$0xf]
        %v555 = vld [vmem:[%s6] sm:$0x1]
        %v557 = vlaneseq
        %v558 = vshrl.u32 %v557, 7
        %v559 = vsub.s32 0, %v558
        %v560 = vrot.slane %v555, %v559
        %v578 = vunpack.c.l.b16 %v539
        %v579 = vunpack.c.l.b16 %v540
        %v580 = vunpack.c.l.b16 %v541
        %v581 = vunpack.c.l.b16 %v542
        %v582 = vunpack.c.l.b16 %v543
        %v583 = vunpack.c.l.b16 %v544
        %v584 = vunpack.c.l.b16 %v545
        %v585 = vunpack.c.l.b16 %v546
        %v586 = vunpack.c.l.b16 %v547
        %v587 = vunpack.c.l.b16 %v548
        %v588 = vunpack.c.l.b16 %v549
        %v589 = vunpack.c.l.b16 %v550
        %v590 = vunpack.c.l.b16 %v551
        %v591 = vunpack.c.l.b16 %v552
        %v592 = vunpack.c.l.b16 %v553
        %v593 = vunpack.c.l.b16 %v554
        %v594 = vpack.c.b16 %v579, %v578
        %v595 = vpack.c.b16 %v581, %v580
        %v596 = vpack.c.b16 %v583, %v582
        %v597 = vpack.c.b16 %v585, %v584
        %v598 = vpack.c.b16 %v587, %v586
        %v599 = vpack.c.b16 %v589, %v588
        %v600 = vpack.c.b16 %v591, %v590
        %v601 = vpack.c.b16 %v593, %v592
        %610 = vmatprep.subr.bf16.mxu0 0
        %611 = vmatpush1.bf16.msra.mxu0 %v594
        %612 = vmatprep.subr.bf16.mxu0 0
        %613 = vmatpush1.bf16.msra.mxu0 %v595
        %614 = vmatprep.subr.bf16.mxu0 0
        %615 = vmatpush1.bf16.msra.mxu0 %v596
        %616 = vmatprep.subr.bf16.mxu0 0
        %617 = vmatpush1.bf16.msra.mxu0 %v597
        %618 = vmatprep.subr.bf16.mxu0 0
        %619 = vmatpush1.bf16.msra.mxu0 %v598
        %620 = vmatprep.subr.bf16.mxu0 0
        %621 = vmatpush1.bf16.msra.mxu0 %v599
        %622 = vmatprep.subr.bf16.mxu0 0
        %623 = vmatpush1.bf16.msra.mxu0 %v600
        %624 = vmatprep.subr.bf16.mxu0 0
        %625 = vmatpush1.bf16.msra.mxu0 %v601
        %626 = vmatprep.subr.bf16.mxu0 0
        %627 = vmatpush1.bf16.msra.mxu0 0
        %628 = vmatprep.subr.bf16.mxu0 0
        %629 = vmatpush1.bf16.msra.mxu0 0
        %630 = vmatprep.subr.bf16.mxu0 0
        %631 = vmatpush1.bf16.msra.mxu0 0
        %632 = vmatprep.subr.bf16.mxu0 0
        %633 = vmatpush1.bf16.msra.mxu0 0
        %634 = vmatprep.subr.bf16.mxu0 0
        %635 = vmatpush1.bf16.msra.mxu0 0
        %636 = vmatprep.subr.bf16.mxu0 0
        %637 = vmatpush1.bf16.msra.mxu0 0
        %638 = vmatprep.subr.bf16.mxu0 0
        %639 = vmatpush1.bf16.msra.mxu0 0
        %640 = vmatprep.subr.bf16.mxu0 0
        %641 = vmatpush1.bf16.msra.mxu0 0
        %642 = vmatprep.mubr.bf16.mxu0 0
        %643 = vmatmul.mubr.bf16.gmra.mrb[0].mxu0 %v538
        %v644 = vpop.f32.mrb[0].mxu0
        %v645 = vadd.f32 %v560, %v644
        %v646 = vpop.f32.mrb[0].mxu0
        %v647 = vpop.f32.mrb[0].mxu0
        %v648 = vpop.f32.mrb[0].mxu0
        %649 = vdwg.mxu0
        %v650 = vpack.c.bf16 %v645, %v645
        %651 = vst [vmem:[%s337] sm:$0xf] %v650
        %p652 = scmp.lt.s32.totalorder %s23, 1
        %s653 = scalar_select %p652, %s23, 1
        %s654 = smul.addr %s653, 4
        %s655 = scalar_lea.vmem %s7, %s654
        // Predicated region
        $region65: #{gaussian_encoder.1} parent=47 // pred_check
          %p656 = pneg %p193
        $region66: #{gaussian_encoder.1} parent=47 // pred_check_branch
          %658 = sbr.rel (%p656) target = $region68
        $region67: #{gaussian_encoder.1} parent=47 // pred_region
          _
        $region68: #{gaussian_encoder.1} parent=47 // pred_fallthru
          _
      $region48: #{gaussian_encoder.1} parent=5 // pred_fallthru
        _
      %p659 = scmp.le.s32.totalorder 2, %s18
      // Predicated region
      $region69: #{gaussian_encoder.1} parent=5 // pred_check
        %p660 = pneg %p659
      $region70: #{gaussian_encoder.1} parent=5 // pred_check_branch
        %662 = sbr.rel (%p660) target = $region72
      $region71: #{gaussian_encoder.1} parent=5 // pred_region
        %s663 = ssub.s32 %s18, 2
        // Predicated region
        $region73: #{gaussian_encoder.1} parent=71 // pred_check
          %p664 = pneg %p199
        $region74: #{gaussian_encoder.1} parent=71 // pred_check_branch
          %666 = sbr.rel (%p664) target = $region76
        $region75: #{gaussian_encoder.1} parent=71 // pred_region
          %p667 = scmp.lt.s32.totalorder %s24, 1
          %s668 = scalar_select %p667, %s24, 1
          %s669 = smul.addr %s668, 4
          %s670 = scalar_lea.vmem %s7, %s669
        $region76: #{gaussian_encoder.1} parent=71 // pred_fallthru
          _
      $region72: #{gaussian_encoder.1} parent=5 // pred_fallthru
        _
    $region6: #{gaussian_encoder.1} parent=1 // loop_footer
      %s22 = sadd.s32 1, %s18
    $region7: #{gaussian_encoder.1} parent=1 // loop_footer_branch
      %17 = sbr.rel target = $region3
    $region8: #{gaussian_encoder.1} parent=1 // loop_exit
      _
    %671 = vsyncpa [#allocation3], 1
    %s672 = scalar_lea.sflag [#allocation3], 1
    %673 = vsyncpa %s672, 1
    %674 = vsyncpa [#allocation5], 1
    %675 = vsyncpa [#allocation8], 1

</llo_original>
